<compile_context>
chip_gen: v6e
topology: v6e:2x2x1
jax: 0.10.0
libtpu: 0.0.40
codegen_flags: <defaults>
</compile_context>

<pallas_src>
import math

import jax
import jax.numpy as jnp
from jax import lax
from jax.experimental import pallas as pl
from jax.experimental.pallas import tpu as pltpu

_LANE = 128
_SUBLANE = 8
_MIB = 1024 * 1024
_HAS_BUFFERED = hasattr(pl, "Buffered")


def _round_up(x, m):
    return ((x + m - 1) // m) * m


def _cdiv(a, b):
    return (a + b - 1) // b


def _pad2(a, rows, cols):
    return jnp.pad(a, ((0, rows - a.shape[0]), (0, cols - a.shape[1])))


def _maybe_single(block_shape, index_map):
    """BlockSpec that is single-buffered when the runtime supports it."""
    if _HAS_BUFFERED:
        return pl.BlockSpec(block_shape, index_map, pipeline_mode=pl.Buffered(1))
    return pl.BlockSpec(block_shape, index_map)


def _const_spec(block_shape):
    """Constant-index block: fetched once; single-buffer it to reclaim VMEM."""
    ndim = len(block_shape)
    return _maybe_single(block_shape, lambda *_: (0,) * ndim)


def _vmem_budget_bytes():
    """~75% of physical VMEM (~96 MiB on v5e/v6e, ~48 MiB on v7x)."""
    try:
        cap = int(pltpu.get_tpu_info().vmem_capacity_bytes)
    except Exception:
        cap = 64 * _MIB  # conservative default (v7x per-TensorCore)
    return (cap * 3) // 4


# --------------------------------------------------------------------------- #
# Kernels
# --------------------------------------------------------------------------- #
def _mlp_resident_kernel(x_ref, w_in_ref, b_in_ref, w_h_ref, b_h_ref,
                         w_out_ref, b_out_ref, o_ref):
    """All weights resident in VMEM; grid = (batch_tiles,) ["parallel"].

    Matmuls accumulate in f32; bias + ReLU in f32; activation carried in the
    compute dtype (one cast per layer).
    """
    h = jnp.dot(x_ref[...], w_in_ref[...], preferred_element_type=jnp.float32)
    h = jnp.maximum(h + b_in_ref[...], 0.0).astype(w_h_ref.dtype)

    num_hidden = w_h_ref.shape[0]

    def layer(l, h):
        hl = jnp.dot(h, w_h_ref[l], preferred_element_type=jnp.float32)
        return jnp.maximum(hl + b_h_ref[l], 0.0).astype(h.dtype)

    if num_hidden <= 8:              # short stacks: fully unroll for the scheduler
        for l in range(num_hidden):
            h = layer(l, h)
    else:
        h = lax.fori_loop(0, num_hidden, layer, h)

    out = jnp.dot(h, w_out_ref[...], preferred_element_type=jnp.float32)
    o_ref[...] = (out + b_out_ref[...]).astype(o_ref.dtype)


def _mlp_stream_kernel(x_ref, w_in_ref, b_in_ref, w_h_ref, b_h_ref,
                       w_out_ref, b_out_ref, o_ref, h_ref):
    """grid = (batch_tiles ["parallel"], hidden_layers ["arbitrary"]).

    Only one (H_P, H_P) hidden-weight block is resident at a time; the
    activation is carried across the layer axis in the compute-dtype scratch.
    INVARIANT: the layer axis must remain the innermost (last) grid axis so the
    output block (constant across k) is written back exactly once per tile.
    """
    k = pl.program_id(1)
    last = pl.num_programs(1) - 1

    @pl.when(k == 0)
    def _():
        h0 = jnp.dot(x_ref[...], w_in_ref[...], preferred_element_type=jnp.float32)
        h_ref[...] = jnp.maximum(h0 + b_in_ref[...], 0.0).astype(h_ref.dtype)

    h = jnp.dot(h_ref[...], w_h_ref[0], preferred_element_type=jnp.float32)
    h_ref[...] = jnp.maximum(h + b_h_ref[0], 0.0).astype(h_ref.dtype)

    @pl.when(k == last)
    def _():
        out = jnp.dot(h_ref[...], w_out_ref[...], preferred_element_type=jnp.float32)
        o_ref[...] = (out + b_out_ref[...]).astype(o_ref.dtype)


def _mlp_no_hidden_kernel(x_ref, w_in_ref, b_in_ref, w_out_ref, b_out_ref, o_ref):
    h = jnp.dot(x_ref[...], w_in_ref[...], preferred_element_type=jnp.float32)
    h = jnp.maximum(h + b_in_ref[...], 0.0).astype(w_out_ref.dtype)
    out = jnp.dot(h, w_out_ref[...], preferred_element_type=jnp.float32)
    o_ref[...] = (out + b_out_ref[...]).astype(o_ref.dtype)


# --------------------------------------------------------------------------- #
# Wrapper
# --------------------------------------------------------------------------- #
def mlp_forward(x, params, hidden_layers: int, *, compute_dtype=jnp.bfloat16,
                batch_tile=None, force_stream: bool = False):
    """Fused MLP forward matching nn.Linear semantics (y = x @ W.T + b).

    x: (B, input_size) f32
    params: w_in (H, in), b_in (1, H), w_h (L, H, H), b_h (L, 1, H),
            w_out (out, H), b_out (1, out)   -- all PyTorch-layout f32.
    compute_dtype: MXU input dtype (bf16 default; f32 for exact parity);
                   accumulation / bias / ReLU are always f32.
    """
    B, in_size = x.shape
    H = params["w_in"].shape[0]
    out_size = params["w_out"].shape[0]
    L = int(hidden_layers)
    f32 = jnp.float32
    itemsize = jnp.dtype(compute_dtype).itemsize

    IN_P = _round_up(in_size, _LANE)
    H_P = _round_up(H, _LANE)
    OUT_P = _round_up(out_size, _LANE)

    # ---- batch tiling --------------------------------------------------------
    B8 = _round_up(B, _SUBLANE)
    if batch_tile is None:
        bt = max(1, _cdiv(B8, 512))          # big tiles amortize per-step overhead
        if B8 >= 256:
            bt = max(bt, 2)                  # >=2 tiles -> both TensorCores on v7x
        TB = _round_up(_cdiv(B8, bt), _SUBLANE)
    else:
        TB = max(_SUBLANE, min(_round_up(batch_tile, _SUBLANE), B8))
    B_P = _round_up(B8, TB)
    bt = B_P // TB

    # ---- padded, pre-transposed operands (free layout plumbing; zero padding
    # keeps the math exact since ReLU(0 + 0) = 0 and padded rows/cols are 0) ---
    x_p = _pad2(x, B_P, IN_P).astype(compute_dtype)
    w_in_t = _pad2(params["w_in"].T, IN_P, H_P).astype(compute_dtype)
    b_in_p = _pad2(params["b_in"], 1, H_P).astype(f32)
    w_out_t = _pad2(params["w_out"].T, H_P, OUT_P).astype(compute_dtype)
    b_out_p = _pad2(params["b_out"], 1, OUT_P).astype(f32)

    flops = int(2 * B_P * (IN_P * H_P + L * H_P * H_P + H_P * OUT_P))
    budget = _vmem_budget_bytes()

    def _limit(est):
        return int(min(budget, max(int(est * 1.5) + 4 * _MIB, 16 * _MIB)))

    io_bytes = int(x_p.size) * itemsize + B_P * OUT_P * 4
    small_w_bytes = int(sum(int(a.size) * a.dtype.itemsize
                            for a in (w_in_t, b_in_p, w_out_t, b_out_p)))

    # -------------------------- hidden_layers == 0 ----------------------------
    if L == 0:
        est = (2 * TB * IN_P * itemsize + 2 * TB * OUT_P * 4
               + small_w_bytes + TB * H_P * 4)
        out_p = pl.pallas_call(
            _mlp_no_hidden_kernel,
            out_shape=jax.ShapeDtypeStruct((B_P, OUT_P), f32),
            grid_spec=pltpu.PrefetchScalarGridSpec(
                num_scalar_prefetch=0,
                grid=(bt,),
                in_specs=[
                    pl.BlockSpec((TB, IN_P), lambda b: (b, 0)),
                    _const_spec((IN_P, H_P)),
                    _const_spec((1, H_P)),
                    _const_spec((H_P, OUT_P)),
                    _const_spec((1, OUT_P)),
                ],
                out_specs=pl.BlockSpec((TB, OUT_P), lambda b: (b, 0)),
            ),
            compiler_params=pltpu.CompilerParams(
                dimension_semantics=("parallel",),
                vmem_limit_bytes=_limit(est),
            ),
            cost_estimate=pl.CostEstimate(flops=flops, transcendentals=0,
                                          bytes_accessed=io_bytes + small_w_bytes),
        )(x_p, w_in_t, b_in_p, w_out_t, b_out_p)
        return out_p[:B, :out_size]

    # ---------------------------- hidden_layers > 0 ---------------------------
    # (L, H, H) -> per-layer pre-transposed, padded: (L, H_P, H_P)
    w_h_t = jnp.pad(jnp.swapaxes(params["w_h"], 1, 2),
                    ((0, 0), (0, H_P - H), (0, H_P - H))).astype(compute_dtype)
    b_h_p = jnp.pad(params["b_h"], ((0, 0), (0, 0), (0, H_P - H))).astype(f32)
    hidden_bytes = int(w_h_t.size) * itemsize + int(b_h_p.size) * 4

    args = (x_p, w_in_t, b_in_p, w_h_t, b_h_p, w_out_t, b_out_p)

    # Resident-path VMEM estimate: x/out double-buffered, all weights once,
    # one live activation slab (f32 pre-ReLU + compute-dtype carry).
    est_resident = (2 * TB * IN_P * itemsize + 2 * TB * OUT_P * 4
                    + small_w_bytes + hidden_bytes
                    + TB * H_P * (4 + itemsize))
    use_resident = (not force_stream) and est_resident <= budget

    if use_resident:
        # Hidden weights DMA'd from HBM exactly once; MXU-bound.
        out_p = pl.pallas_call(
            _mlp_resident_kernel,
            out_shape=jax.ShapeDtypeStruct((B_P, OUT_P), f32),
            grid_spec=pltpu.PrefetchScalarGridSpec(
                num_scalar_prefetch=0,
                grid=(bt,),
                in_specs=[
                    pl.BlockSpec((TB, IN_P), lambda b: (b, 0)),   # x (per batch tile)
                    _const_spec((IN_P, H_P)),                      # w_in (resident)
                    _const_spec((1, H_P)),                         # b_in
                    _const_spec((L, H_P, H_P)),                    # all hidden weights
                    _const_spec((L, 1, H_P)),                      # all hidden biases
                    _const_spec((H_P, OUT_P)),                     # w_out
                    _const_spec((1, OUT_P)),                       # b_out
                ],
                out_specs=pl.BlockSpec((TB, OUT_P), lambda b: (b, 0)),
            ),
            compiler_params=pltpu.CompilerParams(
                dimension_semantics=("parallel",),
                vmem_limit_bytes=_limit(est_resident),
            ),
            cost_estimate=pl.CostEstimate(
                flops=flops, transcendentals=0,
                bytes_accessed=io_bytes + small_w_bytes + hidden_bytes),
        )(*args)
        return out_p[:B, :out_size]

    # Streaming fallback: hidden weights too large to be resident; stream one
    # (H_P, H_P) layer block per inner grid step, pipelined against the matmul.
    # TODO(synk): for very large H on v7x (H_P*H_P*itemsize ~ VMEM), also tile
    # w_h along its output-feature dim with an extra grid axis + ping-pong
    # activation scratch.
    est_stream = (2 * TB * IN_P * itemsize + 2 * TB * OUT_P * 4
                  + small_w_bytes
                  + 2 * (H_P * H_P * itemsize + H_P * 4)   # w_h[k]/b_h[k] x2 buffers
                  + TB * H_P * (4 + itemsize))
    out_p = pl.pallas_call(
        _mlp_stream_kernel,
        out_shape=jax.ShapeDtypeStruct((B_P, OUT_P), f32),
        grid_spec=pltpu.PrefetchScalarGridSpec(
            num_scalar_prefetch=0,
            grid=(bt, L),   # layer axis stays innermost/last (see kernel invariant)
            in_specs=[
                _maybe_single((TB, IN_P), lambda b, k: (b, 0)),   # x (const across k)
                _const_spec((IN_P, H_P)),                          # w_in (resident)
                _const_spec((1, H_P)),                             # b_in
                pl.BlockSpec((1, H_P, H_P), lambda b, k: (k, 0, 0)),  # w_h[k] (pipelined)
                pl.BlockSpec((1, 1, H_P), lambda b, k: (k, 0, 0)),    # b_h[k]
                _const_spec((H_P, OUT_P)),                         # w_out (resident)
                _const_spec((1, OUT_P)),                           # b_out
            ],
            out_specs=pl.BlockSpec((TB, OUT_P), lambda b, k: (b, 0)),
            scratch_shapes=[pltpu.VMEM((TB, H_P), compute_dtype)],  # activation carry
        ),
        compiler_params=pltpu.CompilerParams(
            dimension_semantics=("parallel", "arbitrary"),
            vmem_limit_bytes=_limit(est_stream),
        ),
        cost_estimate=pl.CostEstimate(
            flops=flops, transcendentals=0,
            bytes_accessed=io_bytes + small_w_bytes + bt * hidden_bytes),
    )(*args)
    return out_p[:B, :out_size]


# --------------------------------------------------------------------------- #
# Parameter init (matches the PyTorch module) + pure-JAX reference
# --------------------------------------------------------------------------- #
def xavier_uniform(key, out_features, in_features):
    # torch.nn.init.xavier_uniform_ for a Linear weight of shape (out, in)
    bound = math.sqrt(6.0 / (in_features + out_features))
    return jax.random.uniform(key, (out_features, in_features),
                              minval=-bound, maxval=bound, dtype=jnp.float32)


def init_net_params(key, input_size, output_size, hidden_layers, hidden_size):
    keys = jax.random.split(key, hidden_layers + 2)
    w_in = xavier_uniform(keys[0], hidden_size, input_size)
    b_in = jnp.full((1, hidden_size), 0.01, dtype=jnp.float32)
    if hidden_layers > 0:
        w_h = jnp.stack([xavier_uniform(keys[1 + i], hidden_size, hidden_size)
                         for i in range(hidden_layers)], axis=0)
        b_h = jnp.full((hidden_layers, 1, hidden_size), 0.01, dtype=jnp.float32)
    else:
        w_h = jnp.zeros((0, hidden_size, hidden_size), jnp.float32)
        b_h = jnp.zeros((0, 1, hidden_size), jnp.float32)
    w_out = xavier_uniform(keys[-1], output_size, hidden_size)
    b_out = jnp.full((1, output_size), 0.01, dtype=jnp.float32)
    return {"w_in": w_in, "b_in": b_in, "w_h": w_h, "b_h": b_h,
            "w_out": w_out, "b_out": b_out}


def reference_forward(x, params, hidden_layers):
    h = jnp.maximum(x @ params["w_in"].T + params["b_in"], 0.0)
    for i in range(hidden_layers):
        h = jnp.maximum(h @ params["w_h"][i].T + params["b_h"][i], 0.0)
    return h @ params["w_out"].T + params["b_out"]


if __name__ == "__main__":
    key = jax.random.PRNGKey(0)
    pkey, xkey, xkey2 = jax.random.split(key, 3)

    # Small RL Q-network shapes consistent with the module's usage.
    batch, input_size, hidden_size, hidden_layers, output_size = 8, 4, 32, 2, 2
    params = init_net_params(pkey, input_size, output_size, hidden_layers, hidden_size)
    x = jax.random.normal(xkey, (batch, input_size), dtype=jnp.float32)
    ref = reference_forward(x, params, hidden_layers)

    # Default path: resident weights, bf16 MXU, f32 accumulate.
    out_bf16 = jax.block_until_ready(mlp_forward(x, params, hidden_layers))
    assert out_bf16.shape == (batch, output_size)
    assert jnp.allclose(out_bf16, ref, atol=1e-1, rtol=1e-1)

    # Exact f32 path (nn.Linear parity).
    out_f32 = jax.block_until_ready(
        mlp_forward(x, params, hidden_layers, compute_dtype=jnp.float32))
    assert jnp.allclose(out_f32, ref, atol=1e-4, rtol=1e-4)

    # hidden_layers == 0 path.
    params0 = init_net_params(pkey, input_size, output_size, 0, hidden_size)
    ref0 = reference_forward(x, params0, 0)
    out0 = jax.block_until_ready(
        mlp_forward(x, params0, 0, compute_dtype=jnp.float32))
    assert jnp.allclose(out0, ref0, atol=1e-4, rtol=1e-4)

    # Streaming (layer-pipelined) fallback, forced, with >1 batch tile; f32 so
    # the check is exact.
    batch_s, hidden_s, layers_s = 16, 128, 3
    params_s = init_net_params(pkey, input_size, output_size, layers_s, hidden_s)
    x_s = jax.random.normal(xkey2, (batch_s, input_size), dtype=jnp.float32)
    ref_s = reference_forward(x_s, params_s, layers_s)
    out_s = jax.block_until_ready(
        mlp_forward(x_s, params_s, layers_s, compute_dtype=jnp.float32,
                    force_stream=True, batch_tile=8))
    assert jnp.allclose(out_s, ref_s, atol=1e-3, rtol=1e-3)

    print("KERNEL_OK")
</pallas_src>

<mosaic_0001>
module attributes {stable_mosaic.version = 11 : i64} {
  func.func @_mlp_resident_kernel(%arg0: i32, %arg1: memref<8x128xbf16, #tpu.memory_space<vmem>>, %arg2: memref<128x128xbf16, #tpu.memory_space<vmem>>, %arg3: memref<1x128xf32, #tpu.memory_space<vmem>>, %arg4: memref<2x128x128xbf16, #tpu.memory_space<vmem>>, %arg5: memref<2x1x128xf32, #tpu.memory_space<vmem>>, %arg6: memref<128x128xbf16, #tpu.memory_space<vmem>>, %arg7: memref<1x128xf32, #tpu.memory_space<vmem>>, %arg8: memref<8x128xf32, #tpu.memory_space<vmem>>) attributes {dimension_semantics = [#tpu.dimension_semantics<parallel>], iteration_bounds = array<i64: 1>, scalar_prefetch = 0 : i64, scratch_operands = 0 : i64, tpu.core_type = #tpu.core_type<tc>, window_params = [{transform_indices = @transform_0, window_bounds = array<i64: 8, 128>}, {pipeline_mode = #tpu.pipeline_mode<synchronous>, transform_indices = @transform_1, window_bounds = array<i64: 128, 128>}, {pipeline_mode = #tpu.pipeline_mode<synchronous>, transform_indices = @transform_2, window_bounds = array<i64: 1, 128>}, {pipeline_mode = #tpu.pipeline_mode<synchronous>, transform_indices = @transform_3, window_bounds = array<i64: 2, 128, 128>}, {pipeline_mode = #tpu.pipeline_mode<synchronous>, transform_indices = @transform_4, window_bounds = array<i64: 2, 1, 128>}, {pipeline_mode = #tpu.pipeline_mode<synchronous>, transform_indices = @transform_5, window_bounds = array<i64: 128, 128>}, {pipeline_mode = #tpu.pipeline_mode<synchronous>, transform_indices = @transform_6, window_bounds = array<i64: 1, 128>}, {transform_indices = @transform_7, window_bounds = array<i64: 8, 128>}]} {
    %c0 = arith.constant 0 : index
    %c0_0 = arith.constant 0 : index
    %0 = vector.load %arg1[%c0, %c0_0] : memref<8x128xbf16, #tpu.memory_space<vmem>>, vector<8x128xbf16>
    %c0_1 = arith.constant 0 : index
    %c0_2 = arith.constant 0 : index
    %1 = vector.load %arg2[%c0_1, %c0_2] : memref<128x128xbf16, #tpu.memory_space<vmem>>, vector<128x128xbf16>
    %cst = arith.constant dense<0.000000e+00> : vector<8x128xf32>
    %2 = tpu.matmul %0, %1, %cst {dimension_numbers = #tpu.dot_dimension_numbers<[1], [0], [0], [1], [0, 0, 1, 1], [], []>} : vector<8x128xbf16>, vector<128x128xbf16>, vector<8x128xf32> -> vector<8x128xf32>
    %c0_3 = arith.constant 0 : index
    %c0_4 = arith.constant 0 : index
    %3 = vector.load %arg3[%c0_3, %c0_4] : memref<1x128xf32, #tpu.memory_space<vmem>>, vector<1x128xf32>
    %4 = vector.broadcast %3 : vector<1x128xf32> to vector<8x128xf32>
    %5 = arith.addf %2, %4 : vector<8x128xf32>
    %cst_5 = arith.constant 0.000000e+00 : f32
    %6 = vector.broadcast %cst_5 : f32 to vector<8x128xf32>
    %7 = arith.maximumf %5, %6 : vector<8x128xf32>
    %8 = arith.truncf %7 : vector<8x128xf32> to vector<8x128xbf16>
    %c0_6 = arith.constant 0 : index
    %c0_7 = arith.constant 0 : index
    %c0_8 = arith.constant 0 : index
    %9 = vector.load %arg4[%c0_6, %c0_7, %c0_8] : memref<2x128x128xbf16, #tpu.memory_space<vmem>>, vector<1x128x128xbf16>
    %10 = vector.shape_cast %9 : vector<1x128x128xbf16> to vector<128x128xbf16>
    %cst_9 = arith.constant dense<0.000000e+00> : vector<8x128xf32>
    %11 = tpu.matmul %8, %10, %cst_9 {dimension_numbers = #tpu.dot_dimension_numbers<[1], [0], [0], [1], [0, 0, 1, 1], [], []>} : vector<8x128xbf16>, vector<128x128xbf16>, vector<8x128xf32> -> vector<8x128xf32>
    %c0_10 = arith.constant 0 : index
    %c0_11 = arith.constant 0 : index
    %c0_12 = arith.constant 0 : index
    %12 = vector.load %arg5[%c0_10, %c0_11, %c0_12] : memref<2x1x128xf32, #tpu.memory_space<vmem>>, vector<1x1x128xf32>
    %13 = vector.shape_cast %12 : vector<1x1x128xf32> to vector<1x128xf32>
    %14 = vector.broadcast %13 : vector<1x128xf32> to vector<8x128xf32>
    %15 = arith.addf %11, %14 : vector<8x128xf32>
    %cst_13 = arith.constant 0.000000e+00 : f32
    %16 = vector.broadcast %cst_13 : f32 to vector<8x128xf32>
    %17 = arith.maximumf %15, %16 : vector<8x128xf32>
    %18 = arith.truncf %17 : vector<8x128xf32> to vector<8x128xbf16>
    %c1 = arith.constant 1 : index
    %c0_14 = arith.constant 0 : index
    %c0_15 = arith.constant 0 : index
    %19 = vector.load %arg4[%c1, %c0_14, %c0_15] : memref<2x128x128xbf16, #tpu.memory_space<vmem>>, vector<1x128x128xbf16>
    %20 = vector.shape_cast %19 : vector<1x128x128xbf16> to vector<128x128xbf16>
    %cst_16 = arith.constant dense<0.000000e+00> : vector<8x128xf32>
    %21 = tpu.matmul %18, %20, %cst_16 {dimension_numbers = #tpu.dot_dimension_numbers<[1], [0], [0], [1], [0, 0, 1, 1], [], []>} : vector<8x128xbf16>, vector<128x128xbf16>, vector<8x128xf32> -> vector<8x128xf32>
    %c1_17 = arith.constant 1 : index
    %c0_18 = arith.constant 0 : index
    %c0_19 = arith.constant 0 : index
    %22 = vector.load %arg5[%c1_17, %c0_18, %c0_19] : memref<2x1x128xf32, #tpu.memory_space<vmem>>, vector<1x1x128xf32>
    %23 = vector.shape_cast %22 : vector<1x1x128xf32> to vector<1x128xf32>
    %24 = vector.broadcast %23 : vector<1x128xf32> to vector<8x128xf32>
    %25 = arith.addf %21, %24 : vector<8x128xf32>
    %cst_20 = arith.constant 0.000000e+00 : f32
    %26 = vector.broadcast %cst_20 : f32 to vector<8x128xf32>
    %27 = arith.maximumf %25, %26 : vector<8x128xf32>
    %28 = arith.truncf %27 : vector<8x128xf32> to vector<8x128xbf16>
    %c0_21 = arith.constant 0 : index
    %c0_22 = arith.constant 0 : index
    %29 = vector.load %arg6[%c0_21, %c0_22] : memref<128x128xbf16, #tpu.memory_space<vmem>>, vector<128x128xbf16>
    %cst_23 = arith.constant dense<0.000000e+00> : vector<8x128xf32>
    %30 = tpu.matmul %28, %29, %cst_23 {dimension_numbers = #tpu.dot_dimension_numbers<[1], [0], [0], [1], [0, 0, 1, 1], [], []>} : vector<8x128xbf16>, vector<128x128xbf16>, vector<8x128xf32> -> vector<8x128xf32>
    %c0_24 = arith.constant 0 : index
    %c0_25 = arith.constant 0 : index
    %31 = vector.load %arg7[%c0_24, %c0_25] : memref<1x128xf32, #tpu.memory_space<vmem>>, vector<1x128xf32>
    %32 = vector.broadcast %31 : vector<1x128xf32> to vector<8x128xf32>
    %33 = arith.addf %30, %32 : vector<8x128xf32>
    %c0_26 = arith.constant 0 : index
    %c0_27 = arith.constant 0 : index
    %34 = vector.load %arg8[%c0_26, %c0_27] : memref<8x128xf32, #tpu.memory_space<vmem>>, vector<8x128xf32>
    tpu.vector_store %arg8[%c0_26, %c0_27], %33 {strides = array<i32>} : memref<8x128xf32, #tpu.memory_space<vmem>>, vector<8x128xf32>,
    return
  }
  func.func @transform_0(%arg0: i32) -> (i32, i32) {
    %c0_i32 = arith.constant 0 : i32
    %c0_i32_0 = arith.constant 0 : i32
    return %arg0, %c0_i32 : i32, i32
  }
  func.func @transform_1(%arg0: i32) -> (i32, i32) {
    %c0_i32 = arith.constant 0 : i32
    %c0_i32_0 = arith.constant 0 : i32
    %c0_i32_1 = arith.constant 0 : i32
    return %c0_i32, %c0_i32_0 : i32, i32
  }
  func.func @transform_2(%arg0: i32) -> (i32, i32) {
    %c0_i32 = arith.constant 0 : i32
    %c0_i32_0 = arith.constant 0 : i32
    %c0_i32_1 = arith.constant 0 : i32
    return %c0_i32, %c0_i32_0 : i32, i32
  }
  func.func @transform_3(%arg0: i32) -> (i32, i32, i32) {
    %c0_i32 = arith.constant 0 : i32
    %c0_i32_0 = arith.constant 0 : i32
    %c0_i32_1 = arith.constant 0 : i32
    %c0_i32_2 = arith.constant 0 : i32
    return %c0_i32, %c0_i32_0, %c0_i32_1 : i32, i32, i32
  }
  func.func @transform_4(%arg0: i32) -> (i32, i32, i32) {
    %c0_i32 = arith.constant 0 : i32
    %c0_i32_0 = arith.constant 0 : i32
    %c0_i32_1 = arith.constant 0 : i32
    %c0_i32_2 = arith.constant 0 : i32
    return %c0_i32, %c0_i32_0, %c0_i32_1 : i32, i32, i32
  }
  func.func @transform_5(%arg0: i32) -> (i32, i32) {
    %c0_i32 = arith.constant 0 : i32
    %c0_i32_0 = arith.constant 0 : i32
    %c0_i32_1 = arith.constant 0 : i32
    return %c0_i32, %c0_i32_0 : i32, i32
  }
  func.func @transform_6(%arg0: i32) -> (i32, i32) {
    %c0_i32 = arith.constant 0 : i32
    %c0_i32_0 = arith.constant 0 : i32
    %c0_i32_1 = arith.constant 0 : i32
    return %c0_i32, %c0_i32_0 : i32, i32
  }
  func.func @transform_7(%arg0: i32) -> (i32, i32) {
    %c0_i32 = arith.constant 0 : i32
    %c0_i32_0 = arith.constant 0 : i32
    return %arg0, %c0_i32 : i32, i32
  }
}

</mosaic_0001>

<llo_original>
// kernel: tpu_custom_call.1
$region0: #{tpu_custom_call.1}
  #allocation0 [shape = 'u32[]', space=smem, size = 0x4, offset = 0x4, fixed_abs, tag = 'smem constant byte address 0x4 - core index']
  #allocation1 [shape = 'u32[144,128]{1,0:T(1,128)}', space=vmem, size = 0x12000, scoped, tag = 'internal scratch']
  %s0 = inlined_call_operand.hbm [shape: bf16[8,128], index: 0, kind: input, shape index: {}]
  %s1 = inlined_call_operand.hbm [shape: bf16[128,128], index: 1, kind: input, shape index: {}]
  %s2 = inlined_call_operand.vmem [shape: f32[1,128], index: 2, kind: input, shape index: {}]
  %s3 = inlined_call_operand.hbm [shape: bf16[2,128,128], index: 3, kind: input, shape index: {}]
  %s4 = inlined_call_operand.vmem [shape: f32[2,1,128], index: 4, kind: input, shape index: {}]
  %s5 = inlined_call_operand.hbm [shape: bf16[128,128], index: 5, kind: input, shape index: {}]
  %s6 = inlined_call_operand.vmem [shape: f32[1,128], index: 6, kind: input, shape index: {}]
  %s7 = inlined_call_operand.hbm [shape: f32[8,128], index: 7, kind: output, shape index: {}]
  %s8 = sld [smem:[#allocation0]]
  $region54: #{tpu_custom_call.1} parent=0
    _
  %s10 = ssub.s32 1, %s8
  %s11 = scalar_select 0, %s10, %s8
  $region1: #{tpu_custom_call.1} parent=0
    #allocation2 [shape = 'u8[2048]{0}', space=vmem, size = 0x800, scoped, tag = 'input window, operand 0, single buffered']
    #allocation3 [shape = 's32[1]{0}', space=sflag, size = 0x4, scoped, tag = 'scoped memory for tpu_custom_call.1']
    #allocation4 [shape = 's32[1]{0}', space=sflag, size = 0x4, scoped, tag = 'scoped memory for tpu_custom_call.1']
    #allocation5 [shape = 'u8[32768]{0}', space=vmem, size = 0x8000, scoped, tag = 'input window, operand 1, single buffered']
    #allocation6 [shape = 's32[1]{0}', space=sflag, size = 0x4, scoped, tag = 'scoped memory for tpu_custom_call.1']
    #allocation7 [shape = 'u8[65536]{0}', space=vmem, size = 0x10000, scoped, tag = 'input window, operand 3, single buffered']
    #allocation8 [shape = 'u8[32768]{0}', space=vmem, size = 0x8000, scoped, tag = 'input window, operand 5, single buffered']
    #allocation9 [shape = 's32[1]{0}', space=sflag, size = 0x4, scoped, tag = 'scoped memory for tpu_custom_call.1']
    #allocation10 [shape = 'u8[4096]{0}', space=vmem, size = 0x1000, scoped, tag = 'output window, operand 0, single buffered']
    %12 = vsyncpa [#allocation3], 0
    %13 = vsyncpa [#allocation6], 0
    %14 = vsyncpa [#allocation9], 0
    %15 = vsyncpa [#allocation4], 0
    // Predicated region
    $region2: #{tpu_custom_call.1} parent=1 // pred_check
      _
    $region3: #{tpu_custom_call.1} parent=1 // pred_check_branch
      %17 = sbr.rel (0) target = $region5
    $region4: #{tpu_custom_call.1} parent=1 // pred_region
      %s19 = ssub.s32 64, 64
      %20 = vsyncadd [#allocation3], %s19
      %s22 = sshll.u32 [#allocation2], 4
      %s23 = int_to_ptr.vmem [resolvable:$true] %s22
      %25 = dma.hbm_to_vmem [thread:$0]  %s0, 64, %s23, [#allocation3]
    $region5: #{tpu_custom_call.1} parent=1 // pred_fallthru
      _
    // Predicated region
    $region6: #{tpu_custom_call.1} parent=1 // pred_check
      _
    $region7: #{tpu_custom_call.1} parent=1 // pred_check_branch
      %27 = sbr.rel (0) target = $region9
    $region8: #{tpu_custom_call.1} parent=1 // pred_region
      %s29 = ssub.s32 1024, 1024
      %30 = vsyncadd [#allocation6], %s29
      %s31 = sshll.u32 [#allocation5], 4
      %s32 = int_to_ptr.vmem [resolvable:$true] %s31
      %37 = dma.hbm_to_vmem [thread:$0]  %s1, 1024, %s32, [#allocation6], 64, 64, 4
    $region9: #{tpu_custom_call.1} parent=1 // pred_fallthru
      _
    // Predicated region
    $region10: #{tpu_custom_call.1} parent=1 // pred_check
      _
    $region11: #{tpu_custom_call.1} parent=1 // pred_check_branch
      %39 = sbr.rel (0) target = $region13
    $region12: #{tpu_custom_call.1} parent=1 // pred_region
      _
    $region13: #{tpu_custom_call.1} parent=1 // pred_fallthru
      _
    // Predicated region
    $region14: #{tpu_custom_call.1} parent=1 // pred_check
      _
    $region15: #{tpu_custom_call.1} parent=1 // pred_check_branch
      %41 = sbr.rel (0) target = $region17
    $region16: #{tpu_custom_call.1} parent=1 // pred_region
      %s43 = ssub.s32 2048, 2048
      %44 = vsyncadd [#allocation6], %s43
      %s45 = sshll.u32 [#allocation7], 4
      %s46 = int_to_ptr.vmem [resolvable:$true] %s45
      %51 = dma.hbm_to_vmem [thread:$0]  %s3, 2048, %s46, [#allocation6], 64, 64, 4
    $region17: #{tpu_custom_call.1} parent=1 // pred_fallthru
      _
    // Predicated region
    $region18: #{tpu_custom_call.1} parent=1 // pred_check
      _
    $region19: #{tpu_custom_call.1} parent=1 // pred_check_branch
      %53 = sbr.rel (0) target = $region21
    $region20: #{tpu_custom_call.1} parent=1 // pred_region
      _
    $region21: #{tpu_custom_call.1} parent=1 // pred_fallthru
      _
    // Predicated region
    $region22: #{tpu_custom_call.1} parent=1 // pred_check
      _
    $region23: #{tpu_custom_call.1} parent=1 // pred_check_branch
      %55 = sbr.rel (0) target = $region25
    $region24: #{tpu_custom_call.1} parent=1 // pred_region
      %s57 = ssub.s32 1024, 1024
      %58 = vsyncadd [#allocation9], %s57
      %s59 = sshll.u32 [#allocation8], 4
      %s60 = int_to_ptr.vmem [resolvable:$true] %s59
      %65 = dma.hbm_to_vmem [thread:$0]  %s5, 1024, %s60, [#allocation9], 64, 64, 4
    $region25: #{tpu_custom_call.1} parent=1 // pred_fallthru
      _
    // Predicated region
    $region26: #{tpu_custom_call.1} parent=1 // pred_check
      _
    $region27: #{tpu_custom_call.1} parent=1 // pred_check_branch
      %67 = sbr.rel (0) target = $region29
    $region28: #{tpu_custom_call.1} parent=1 // pred_region
      _
    $region29: #{tpu_custom_call.1} parent=1 // pred_fallthru
      _
    // Predicated region
    $region30: #{tpu_custom_call.1} parent=1 // pred_check
      _
    $region31: #{tpu_custom_call.1} parent=1 // pred_check_branch
      %69 = sbr.rel (0) target = $region33
    $region32: #{tpu_custom_call.1} parent=1 // pred_region
      %70 = dma.done [#allocation3], 64
    $region33: #{tpu_custom_call.1} parent=1 // pred_fallthru
      _
    // Predicated region
    $region34: #{tpu_custom_call.1} parent=1 // pred_check
      _
    $region35: #{tpu_custom_call.1} parent=1 // pred_check_branch
      %72 = sbr.rel (0) target = $region37
    $region36: #{tpu_custom_call.1} parent=1 // pred_region
      %73 = dma.done [#allocation6], 1024
    $region37: #{tpu_custom_call.1} parent=1 // pred_fallthru
      _
    // Predicated region
    $region38: #{tpu_custom_call.1} parent=1 // pred_check
      _
    $region39: #{tpu_custom_call.1} parent=1 // pred_check_branch
      %75 = sbr.rel (0) target = $region41
    $region40: #{tpu_custom_call.1} parent=1 // pred_region
      %76 = dma.done [#allocation6], 2048
    $region41: #{tpu_custom_call.1} parent=1 // pred_fallthru
      _
    // Predicated region
    $region42: #{tpu_custom_call.1} parent=1 // pred_check
      _
    $region43: #{tpu_custom_call.1} parent=1 // pred_check_branch
      %78 = sbr.rel (0) target = $region45
    $region44: #{tpu_custom_call.1} parent=1 // pred_region
      %79 = dma.done [#allocation9], 1024
    $region45: #{tpu_custom_call.1} parent=1 // pred_fallthru
      _
    %v81 = vld [vmem:[#allocation2] sm:$0xf]
    %v82 = vld [vmem:[#allocation5] sm:$0xf]
    %v83 = vld [vmem:[#allocation5 + $0x4] sm:$0xf]
    %v84 = vld [vmem:[#allocation5 + $0x8] sm:$0xf]
    %v85 = vld [vmem:[#allocation5 + $0xc] sm:$0xf]
    %v86 = vld [vmem:[#allocation5 + $0x10] sm:$0xf]
    %v87 = vld [vmem:[#allocation5 + $0x14] sm:$0xf]
    %v88 = vld [vmem:[#allocation5 + $0x18] sm:$0xf]
    %v89 = vld [vmem:[#allocation5 + $0x1c] sm:$0xf]
    %v90 = vld [vmem:[#allocation5 + $0x20] sm:$0xf]
    %v91 = vld [vmem:[#allocation5 + $0x24] sm:$0xf]
    %v92 = vld [vmem:[#allocation5 + $0x28] sm:$0xf]
    %v93 = vld [vmem:[#allocation5 + $0x2c] sm:$0xf]
    %v94 = vld [vmem:[#allocation5 + $0x30] sm:$0xf]
    %v95 = vld [vmem:[#allocation5 + $0x34] sm:$0xf]
    %v96 = vld [vmem:[#allocation5 + $0x38] sm:$0xf]
    %v97 = vld [vmem:[#allocation5 + $0x3c] sm:$0xf]
    %v98 = vld [vmem:[%s2] sm:$0x1]
    %v100 = vlaneseq
    %v101 = vshrl.u32 %v100, 7
    %v102 = vsub.s32 0, %v101
    %v103 = vrot.slane %v98, %v102
    %v121 = vunpack.c.l.b16 %v82
    %v122 = vunpack.c.l.b16 %v83
    %v123 = vunpack.c.l.b16 %v84
    %v124 = vunpack.c.l.b16 %v85
    %v125 = vunpack.c.l.b16 %v86
    %v126 = vunpack.c.l.b16 %v87
    %v127 = vunpack.c.l.b16 %v88
    %v128 = vunpack.c.l.b16 %v89
    %v129 = vunpack.c.l.b16 %v90
    %v130 = vunpack.c.l.b16 %v91
    %v131 = vunpack.c.l.b16 %v92
    %v132 = vunpack.c.l.b16 %v93
    %v133 = vunpack.c.l.b16 %v94
    %v134 = vunpack.c.l.b16 %v95
    %v135 = vunpack.c.l.b16 %v96
    %v136 = vunpack.c.l.b16 %v97
    %v137 = vpack.c.b16 %v122, %v121
    %v138 = vpack.c.b16 %v124, %v123
    %v139 = vpack.c.b16 %v126, %v125
    %v140 = vpack.c.b16 %v128, %v127
    %v141 = vpack.c.b16 %v130, %v129
    %v142 = vpack.c.b16 %v132, %v131
    %v143 = vpack.c.b16 %v134, %v133
    %v144 = vpack.c.b16 %v136, %v135
    %153 = vmatprep.subr.bf16.mxu0 0
    %154 = vmatpush1.bf16.msra.mxu0 %v144
    %155 = vmatprep.subr.bf16.mxu0 0
    %156 = vmatpush1.bf16.msra.mxu0 %v143
    %157 = vmatprep.subr.bf16.mxu0 0
    %158 = vmatpush1.bf16.msra.mxu0 %v142
    %159 = vmatprep.subr.bf16.mxu0 0
    %160 = vmatpush1.bf16.msra.mxu0 %v141
    %161 = vmatprep.subr.bf16.mxu0 0
    %162 = vmatpush1.bf16.msra.mxu0 %v140
    %163 = vmatprep.subr.bf16.mxu0 0
    %164 = vmatpush1.bf16.msra.mxu0 %v139
    %165 = vmatprep.subr.bf16.mxu0 0
    %166 = vmatpush1.bf16.msra.mxu0 %v138
    %167 = vmatprep.subr.bf16.mxu0 0
    %168 = vmatpush1.bf16.msra.mxu0 %v137
    %169 = vmatprep.subr.bf16.mxu0 0
    %170 = vmatpush2.bf16.msra.mxu0 0
    %171 = vmatprep.subr.bf16.mxu0 0
    %172 = vmatpush2.bf16.msra.mxu0 0
    %173 = vmatprep.subr.bf16.mxu0 0
    %174 = vmatpush2.bf16.msra.mxu0 0
    %175 = vmatprep.subr.bf16.mxu0 0
    %176 = vmatpush2.bf16.msra.mxu0 0
    %177 = vmatprep.subr.bf16.mxu0 0
    %178 = vmatpush2.bf16.msra.mxu0 0
    %179 = vmatprep.subr.bf16.mxu0 0
    %180 = vmatpush2.bf16.msra.mxu0 0
    %181 = vmatprep.subr.bf16.mxu0 0
    %182 = vmatpush2.bf16.msra.mxu0 0
    %183 = vmatprep.subr.bf16.mxu0 0
    %184 = vmatpush2.bf16.msra.mxu0 0
    %185 = vmatprep.mubr.bf16.mxu0 0
    %186 = vmatmul.mubr.bf16.gmra.mxu0 %v81
    %v187 = vpop.f32.mrf.mxu0
    %v188 = vadd.f32 %v103, %v187
    %v189 = vpop.f32.mrf.mxu0
    %v190 = vpop.f32.mrf.mxu0
    %v191 = vpop.f32.mrf.mxu0
    %192 = vdwg.mxu0
    %v193 = vmax.f32 %v188, 0.0
    %v194 = vpack.c.bf16 %v193, %v193
    %v195 = vld [vmem:[#allocation7] sm:$0xf]
    %v196 = vld [vmem:[#allocation7 + $0x4] sm:$0xf]
    %v197 = vld [vmem:[#allocation7 + $0x8] sm:$0xf]
    %v198 = vld [vmem:[#allocation7 + $0xc] sm:$0xf]
    %v199 = vld [vmem:[#allocation7 + $0x10] sm:$0xf]
    %v200 = vld [vmem:[#allocation7 + $0x14] sm:$0xf]
    %v201 = vld [vmem:[#allocation7 + $0x18] sm:$0xf]
    %v202 = vld [vmem:[#allocation7 + $0x1c] sm:$0xf]
    %v203 = vld [vmem:[#allocation7 + $0x20] sm:$0xf]
    %v204 = vld [vmem:[#allocation7 + $0x24] sm:$0xf]
    %v205 = vld [vmem:[#allocation7 + $0x28] sm:$0xf]
    %v206 = vld [vmem:[#allocation7 + $0x2c] sm:$0xf]
    %v207 = vld [vmem:[#allocation7 + $0x30] sm:$0xf]
    %v208 = vld [vmem:[#allocation7 + $0x34] sm:$0xf]
    %v209 = vld [vmem:[#allocation7 + $0x38] sm:$0xf]
    %v210 = vld [vmem:[#allocation7 + $0x3c] sm:$0xf]
    %v211 = vld [vmem:[%s4] sm:$0x1]
    %v213 = vlaneseq
    %v214 = vshrl.u32 %v213, 7
    %v215 = vsub.s32 0, %v214
    %v216 = vrot.slane %v211, %v215
    %v234 = vunpack.c.l.b16 %v195
    %v235 = vunpack.c.l.b16 %v196
    %v236 = vunpack.c.l.b16 %v197
    %v237 = vunpack.c.l.b16 %v198
    %v238 = vunpack.c.l.b16 %v199
    %v239 = vunpack.c.l.b16 %v200
    %v240 = vunpack.c.l.b16 %v201
    %v241 = vunpack.c.l.b16 %v202
    %v242 = vunpack.c.l.b16 %v203
    %v243 = vunpack.c.l.b16 %v204
    %v244 = vunpack.c.l.b16 %v205
    %v245 = vunpack.c.l.b16 %v206
    %v246 = vunpack.c.l.b16 %v207
    %v247 = vunpack.c.l.b16 %v208
    %v248 = vunpack.c.l.b16 %v209
    %v249 = vunpack.c.l.b16 %v210
    %v250 = vpack.c.b16 %v235, %v234
    %v251 = vpack.c.b16 %v237, %v236
    %v252 = vpack.c.b16 %v239, %v238
    %v253 = vpack.c.b16 %v241, %v240
    %v254 = vpack.c.b16 %v243, %v242
    %v255 = vpack.c.b16 %v245, %v244
    %v256 = vpack.c.b16 %v247, %v246
    %v257 = vpack.c.b16 %v249, %v248
    %266 = vmatprep.subr.bf16.mxu0 0
    %267 = vmatpush1.bf16.msra.mxu0 %v257
    %268 = vmatprep.subr.bf16.mxu0 0
    %269 = vmatpush1.bf16.msra.mxu0 %v256
    %270 = vmatprep.subr.bf16.mxu0 0
    %271 = vmatpush1.bf16.msra.mxu0 %v255
    %272 = vmatprep.subr.bf16.mxu0 0
    %273 = vmatpush1.bf16.msra.mxu0 %v254
    %274 = vmatprep.subr.bf16.mxu0 0
    %275 = vmatpush1.bf16.msra.mxu0 %v253
    %276 = vmatprep.subr.bf16.mxu0 0
    %277 = vmatpush1.bf16.msra.mxu0 %v252
    %278 = vmatprep.subr.bf16.mxu0 0
    %279 = vmatpush1.bf16.msra.mxu0 %v251
    %280 = vmatprep.subr.bf16.mxu0 0
    %281 = vmatpush1.bf16.msra.mxu0 %v250
    %282 = vmatprep.subr.bf16.mxu0 0
    %283 = vmatpush2.bf16.msra.mxu0 0
    %284 = vmatprep.subr.bf16.mxu0 0
    %285 = vmatpush2.bf16.msra.mxu0 0
    %286 = vmatprep.subr.bf16.mxu0 0
    %287 = vmatpush2.bf16.msra.mxu0 0
    %288 = vmatprep.subr.bf16.mxu0 0
    %289 = vmatpush2.bf16.msra.mxu0 0
    %290 = vmatprep.subr.bf16.mxu0 0
    %291 = vmatpush2.bf16.msra.mxu0 0
    %292 = vmatprep.subr.bf16.mxu0 0
    %293 = vmatpush2.bf16.msra.mxu0 0
    %294 = vmatprep.subr.bf16.mxu0 0
    %295 = vmatpush2.bf16.msra.mxu0 0
    %296 = vmatprep.subr.bf16.mxu0 0
    %297 = vmatpush2.bf16.msra.mxu0 0
    %298 = vmatprep.mubr.bf16.mxu0 0
    %299 = vmatmul.mubr.bf16.gmra.mxu0 %v194
    %v300 = vpop.f32.mrf.mxu0
    %v301 = vadd.f32 %v216, %v300
    %v302 = vpop.f32.mrf.mxu0
    %v303 = vpop.f32.mrf.mxu0
    %v304 = vpop.f32.mrf.mxu0
    %305 = vdwg.mxu0
    %v306 = vmax.f32 %v301, 0.0
    %v307 = vpack.c.bf16 %v306, %v306
    %s308 = scalar_lea.vmem [#allocation7], 64
    %v309 = vld [vmem:[%s308] sm:$0xf]
    %v310 = vld [vmem:[%s308 + $0x4] sm:$0xf]
    %v311 = vld [vmem:[%s308 + $0x8] sm:$0xf]
    %v312 = vld [vmem:[%s308 + $0xc] sm:$0xf]
    %v313 = vld [vmem:[%s308 + $0x10] sm:$0xf]
    %v314 = vld [vmem:[%s308 + $0x14] sm:$0xf]
    %v315 = vld [vmem:[%s308 + $0x18] sm:$0xf]
    %v316 = vld [vmem:[%s308 + $0x1c] sm:$0xf]
    %v317 = vld [vmem:[%s308 + $0x20] sm:$0xf]
    %v318 = vld [vmem:[%s308 + $0x24] sm:$0xf]
    %v319 = vld [vmem:[%s308 + $0x28] sm:$0xf]
    %v320 = vld [vmem:[%s308 + $0x2c] sm:$0xf]
    %v321 = vld [vmem:[%s308 + $0x30] sm:$0xf]
    %v322 = vld [vmem:[%s308 + $0x34] sm:$0xf]
    %v323 = vld [vmem:[%s308 + $0x38] sm:$0xf]
    %v324 = vld [vmem:[%s308 + $0x3c] sm:$0xf]
    %s325 = scalar_lea.vmem %s4, 1
    %v326 = vld [vmem:[%s325] sm:$0x1]
    %v328 = vlaneseq
    %v329 = vshrl.u32 %v328, 7
    %v330 = vsub.s32 0, %v329
    %v331 = vrot.slane %v326, %v330
    %v349 = vunpack.c.l.b16 %v309
    %v350 = vunpack.c.l.b16 %v310
    %v351 = vunpack.c.l.b16 %v311
    %v352 = vunpack.c.l.b16 %v312
    %v353 = vunpack.c.l.b16 %v313
    %v354 = vunpack.c.l.b16 %v314
    %v355 = vunpack.c.l.b16 %v315
    %v356 = vunpack.c.l.b16 %v316
    %v357 = vunpack.c.l.b16 %v317
    %v358 = vunpack.c.l.b16 %v318
    %v359 = vunpack.c.l.b16 %v319
    %v360 = vunpack.c.l.b16 %v320
    %v361 = vunpack.c.l.b16 %v321
    %v362 = vunpack.c.l.b16 %v322
    %v363 = vunpack.c.l.b16 %v323
    %v364 = vunpack.c.l.b16 %v324
    %v365 = vpack.c.b16 %v350, %v349
    %v366 = vpack.c.b16 %v352, %v351
    %v367 = vpack.c.b16 %v354, %v353
    %v368 = vpack.c.b16 %v356, %v355
    %v369 = vpack.c.b16 %v358, %v357
    %v370 = vpack.c.b16 %v360, %v359
    %v371 = vpack.c.b16 %v362, %v361
    %v372 = vpack.c.b16 %v364, %v363
    %381 = vmatprep.subr.bf16.mxu0 0
    %382 = vmatpush1.bf16.msra.mxu0 %v372
    %383 = vmatprep.subr.bf16.mxu0 0
    %384 = vmatpush1.bf16.msra.mxu0 %v371
    %385 = vmatprep.subr.bf16.mxu0 0
    %386 = vmatpush1.bf16.msra.mxu0 %v370
    %387 = vmatprep.subr.bf16.mxu0 0
    %388 = vmatpush1.bf16.msra.mxu0 %v369
    %389 = vmatprep.subr.bf16.mxu0 0
    %390 = vmatpush1.bf16.msra.mxu0 %v368
    %391 = vmatprep.subr.bf16.mxu0 0
    %392 = vmatpush1.bf16.msra.mxu0 %v367
    %393 = vmatprep.subr.bf16.mxu0 0
    %394 = vmatpush1.bf16.msra.mxu0 %v366
    %395 = vmatprep.subr.bf16.mxu0 0
    %396 = vmatpush1.bf16.msra.mxu0 %v365
    %397 = vmatprep.subr.bf16.mxu0 0
    %398 = vmatpush2.bf16.msra.mxu0 0
    %399 = vmatprep.subr.bf16.mxu0 0
    %400 = vmatpush2.bf16.msra.mxu0 0
    %401 = vmatprep.subr.bf16.mxu0 0
    %402 = vmatpush2.bf16.msra.mxu0 0
    %403 = vmatprep.subr.bf16.mxu0 0
    %404 = vmatpush2.bf16.msra.mxu0 0
    %405 = vmatprep.subr.bf16.mxu0 0
    %406 = vmatpush2.bf16.msra.mxu0 0
    %407 = vmatprep.subr.bf16.mxu0 0
    %408 = vmatpush2.bf16.msra.mxu0 0
    %409 = vmatprep.subr.bf16.mxu0 0
    %410 = vmatpush2.bf16.msra.mxu0 0
    %411 = vmatprep.subr.bf16.mxu0 0
    %412 = vmatpush2.bf16.msra.mxu0 0
    %413 = vmatprep.mubr.bf16.mxu0 0
    %414 = vmatmul.mubr.bf16.gmra.mxu0 %v307
    %v415 = vpop.f32.mrf.mxu0
    %v416 = vadd.f32 %v331, %v415
    %v417 = vpop.f32.mrf.mxu0
    %v418 = vpop.f32.mrf.mxu0
    %v419 = vpop.f32.mrf.mxu0
    %420 = vdwg.mxu0
    %v421 = vmax.f32 %v416, 0.0
    %v422 = vpack.c.bf16 %v421, %v421
    %v423 = vld [vmem:[#allocation8] sm:$0xf]
    %v424 = vld [vmem:[#allocation8 + $0x4] sm:$0xf]
    %v425 = vld [vmem:[#allocation8 + $0x8] sm:$0xf]
    %v426 = vld [vmem:[#allocation8 + $0xc] sm:$0xf]
    %v427 = vld [vmem:[#allocation8 + $0x10] sm:$0xf]
    %v428 = vld [vmem:[#allocation8 + $0x14] sm:$0xf]
    %v429 = vld [vmem:[#allocation8 + $0x18] sm:$0xf]
    %v430 = vld [vmem:[#allocation8 + $0x1c] sm:$0xf]
    %v431 = vld [vmem:[#allocation8 + $0x20] sm:$0xf]
    %v432 = vld [vmem:[#allocation8 + $0x24] sm:$0xf]
    %v433 = vld [vmem:[#allocation8 + $0x28] sm:$0xf]
    %v434 = vld [vmem:[#allocation8 + $0x2c] sm:$0xf]
    %v435 = vld [vmem:[#allocation8 + $0x30] sm:$0xf]
    %v436 = vld [vmem:[#allocation8 + $0x34] sm:$0xf]
    %v437 = vld [vmem:[#allocation8 + $0x38] sm:$0xf]
    %v438 = vld [vmem:[#allocation8 + $0x3c] sm:$0xf]
    %v439 = vld [vmem:[%s6] sm:$0x1]
    %v441 = vlaneseq
    %v442 = vshrl.u32 %v441, 7
    %v443 = vsub.s32 0, %v442
    %v444 = vrot.slane %v439, %v443
    %v462 = vunpack.c.l.b16 %v423
    %v463 = vunpack.c.l.b16 %v424
    %v464 = vunpack.c.l.b16 %v425
    %v465 = vunpack.c.l.b16 %v426
    %v466 = vunpack.c.l.b16 %v427
    %v467 = vunpack.c.l.b16 %v428
    %v468 = vunpack.c.l.b16 %v429
    %v469 = vunpack.c.l.b16 %v430
    %v470 = vunpack.c.l.b16 %v431
    %v471 = vunpack.c.l.b16 %v432
    %v472 = vunpack.c.l.b16 %v433
    %v473 = vunpack.c.l.b16 %v434
    %v474 = vunpack.c.l.b16 %v435
    %v475 = vunpack.c.l.b16 %v436
    %v476 = vunpack.c.l.b16 %v437
    %v477 = vunpack.c.l.b16 %v438
    %v478 = vpack.c.b16 %v463, %v462
    %v479 = vpack.c.b16 %v465, %v464
    %v480 = vpack.c.b16 %v467, %v466
    %v481 = vpack.c.b16 %v469, %v468
    %v482 = vpack.c.b16 %v471, %v470
    %v483 = vpack.c.b16 %v473, %v472
    %v484 = vpack.c.b16 %v475, %v474
    %v485 = vpack.c.b16 %v477, %v476
    %494 = vmatprep.subr.bf16.mxu0 0
    %495 = vmatpush1.bf16.msra.mxu0 %v485
    %496 = vmatprep.subr.bf16.mxu0 0
    %497 = vmatpush1.bf16.msra.mxu0 %v484
    %498 = vmatprep.subr.bf16.mxu0 0
    %499 = vmatpush1.bf16.msra.mxu0 %v483
    %500 = vmatprep.subr.bf16.mxu0 0
    %501 = vmatpush1.bf16.msra.mxu0 %v482
    %502 = vmatprep.subr.bf16.mxu0 0
    %503 = vmatpush1.bf16.msra.mxu0 %v481
    %504 = vmatprep.subr.bf16.mxu0 0
    %505 = vmatpush1.bf16.msra.mxu0 %v480
    %506 = vmatprep.subr.bf16.mxu0 0
    %507 = vmatpush1.bf16.msra.mxu0 %v479
    %508 = vmatprep.subr.bf16.mxu0 0
    %509 = vmatpush1.bf16.msra.mxu0 %v478
    %510 = vmatprep.subr.bf16.mxu0 0
    %511 = vmatpush2.bf16.msra.mxu0 0
    %512 = vmatprep.subr.bf16.mxu0 0
    %513 = vmatpush2.bf16.msra.mxu0 0
    %514 = vmatprep.subr.bf16.mxu0 0
    %515 = vmatpush2.bf16.msra.mxu0 0
    %516 = vmatprep.subr.bf16.mxu0 0
    %517 = vmatpush2.bf16.msra.mxu0 0
    %518 = vmatprep.subr.bf16.mxu0 0
    %519 = vmatpush2.bf16.msra.mxu0 0
    %520 = vmatprep.subr.bf16.mxu0 0
    %521 = vmatpush2.bf16.msra.mxu0 0
    %522 = vmatprep.subr.bf16.mxu0 0
    %523 = vmatpush2.bf16.msra.mxu0 0
    %524 = vmatprep.subr.bf16.mxu0 0
    %525 = vmatpush2.bf16.msra.mxu0 0
    %526 = vmatprep.mubr.bf16.mxu0 0
    %527 = vmatmul.mubr.bf16.gmra.mxu0 %v422
    %v528 = vpop.f32.mrf.mxu0
    %v529 = vadd.f32 %v444, %v528
    %v530 = vpop.f32.mrf.mxu0
    %v531 = vpop.f32.mrf.mxu0
    %v532 = vpop.f32.mrf.mxu0
    %533 = vdwg.mxu0
    %534 = vst [vmem:[#allocation10] sm:$0xff] %v529
    // Predicated region
    $region46: #{tpu_custom_call.1} parent=1 // pred_check
      _
    $region47: #{tpu_custom_call.1} parent=1 // pred_check_branch
      %536 = sbr.rel (0) target = $region49
    $region48: #{tpu_custom_call.1} parent=1 // pred_region
      %s538 = ssub.s32 128, 128
      %539 = vsyncadd [#allocation4], %s538
      %s541 = sshll.u32 [#allocation10], 4
      %s542 = int_to_ptr.vmem [resolvable:$true] %s541
      %544 = dma.vmem_to_hbm [thread:$0]  %s542, 128, %s7, [#allocation4]
    $region49: #{tpu_custom_call.1} parent=1 // pred_fallthru
      _
    // Predicated region
    $region50: #{tpu_custom_call.1} parent=1 // pred_check
      _
    $region51: #{tpu_custom_call.1} parent=1 // pred_check_branch
      %546 = sbr.rel (0) target = $region53
    $region52: #{tpu_custom_call.1} parent=1 // pred_region
      %547 = dma.done [#allocation4], 128
    $region53: #{tpu_custom_call.1} parent=1 // pred_fallthru
      _
    %548 = vsyncpa [#allocation3], 1
    %549 = vsyncpa [#allocation6], 1
    %550 = vsyncpa [#allocation9], 1
    %551 = vsyncpa [#allocation4], 1

</llo_original>
